<compile_context>
chip_gen: v7x
topology: tpu7x:2x2x1
jax: 0.10.0
libtpu: 0.0.40
codegen_flags: <defaults>
</compile_context>

<pallas_src>
import functools

import jax
import jax.numpy as jnp
from jax.experimental import pallas as pl
from jax.experimental.pallas import tpu as pltpu

_MAX_UNROLL = 16  # max layers unrolled inside one grid step


def _round_up(v, m):
    return (v + m - 1) // m * m


def _vmem_capacity_bytes():
    """Physical VMEM of the current TPU generation (fallback: v7x's 64 MiB)."""
    try:
        return int(pltpu.get_tpu_info().vmem_capacity_bytes)
    except Exception:
        return 64 << 20


def _highway_kernel(x_ref, w_ref, b_ref, o_ref, x_acc, *,
                    lc, size_p, num_layers, n_chunks, needs_mask):
    """One grid step = (batch tile b, layer-chunk c); processes `lc` layers.

    x_acc : VMEM f32 scratch carrying activations across the layer-chunk axis.
    w_ref : fused weights for this chunk [lc, S, 3S] = [gate | nonlinear | linear].
    b_ref : fully resident fused bias stack [Lp, 3S] (f32).
    """
    c = pl.program_id(1)

    @pl.when(c == 0)
    def _init():
        x_acc[...] = x_ref[...].astype(jnp.float32)

    x = x_acc[...]                                       # (TB, S) f32
    for i in range(lc):                                  # static unroll, lc <= _MAX_UNROLL
        w = w_ref[i]                                     # (S, 3S) weights for layer i of chunk
        li = i if n_chunks == 1 else c * lc + i          # bias stack is resident -> global index
        b = b_ref[pl.ds(li, 1), :]                       # (1, 3S) f32

        # Single fused MXU push per layer, f32 accumulation.
        y = jnp.dot(x.astype(w.dtype), w, preferred_element_type=jnp.float32) + b

        gate = jax.nn.sigmoid(y[:, :size_p])
        nonlinear = jax.nn.relu(y[:, size_p:2 * size_p])   # f = ReLU
        linear = y[:, 2 * size_p:]
        # linear + gate*(nonlinear - linear) == gate*nonlinear + (1-gate)*linear
        x_new = linear + gate * (nonlinear - linear)
        if needs_mask:
            # Zero-padded dummy layers at the tail of the last chunk act as identity.
            x_new = jnp.where(c * lc + i < num_layers, x_new, x)
        x = x_new

    if n_chunks > 1:
        @pl.when(c < n_chunks - 1)
        def _carry():
            x_acc[...] = x

    @pl.when(c == n_chunks - 1)
    def _finalize():
        o_ref[...] = x.astype(o_ref.dtype)


def highway(x, wg, bg, wn, bn, wl, bl, *, block_batch=512, param_dtype=None):
    """x: [batch, size]; w*: [L, size, size] (laid out so y = x @ W); b*: [L, size].

    param_dtype=jnp.bfloat16 streams weights in bf16 (f32 accumulation kept) --
    the main lever on v5e. Note: activations are also rounded to bf16 at each
    layer's MXU input in that mode.
    """
    batch, size = x.shape
    num_layers = wg.shape[0]

    if param_dtype is not None:
        wg, wn, wl = (w.astype(param_dtype) for w in (wg, wn, wl))
        bg, bn, bl = (b.astype(param_dtype) for b in (bg, bn, bl))

    size_p = _round_up(size, 128)
    w_itemsize = jnp.dtype(wg.dtype).itemsize
    x_itemsize = jnp.dtype(x.dtype).itemsize

    # --- batch tiling --------------------------------------------------------
    tb = min(block_batch, _round_up(batch, 8))
    # v7x megacore: with a single batch tile the "parallel" axis has extent 1
    # and one TensorCore idles; split once when the halves stay MXU-friendly.
    if tb >= 512 and _round_up(batch, tb) // tb < 2:
        tb = _round_up(tb // 2, 8)
    batch_p = _round_up(batch, tb)

    # --- VMEM budget, clamped to this generation's physical capacity ---------
    vmem_cap = _vmem_capacity_bytes()
    usable = max(min(vmem_cap - (8 << 20), 100 << 20), 24 << 20)

    def footprint(tb_, lc_, lp_):
        w_bytes = 2 * lc_ * size_p * 3 * size_p * w_itemsize        # double-buffered weight chunk
        b_bytes = 2 * lp_ * 3 * size_p * 4                          # resident f32 bias stack
        xo_bytes = 4 * tb_ * size_p * x_itemsize                    # x + out tiles (double-buffered)
        acc_bytes = tb_ * size_p * 4                                # f32 activation scratch
        tmp_bytes = tb_ * 3 * size_p * 4 + 4 * tb_ * size_p * 4     # y + gate/relu/linear temps
        return w_bytes + b_bytes + xo_bytes + acc_bytes + tmp_bytes

    # --- layer chunking / weight residency ------------------------------------
    if num_layers <= _MAX_UNROLL and footprint(tb, num_layers, num_layers) <= usable:
        # Whole fused stack fits: single chunk, constant weight index_map ->
        # weights DMA'd once and reused by every batch tile.
        lc = num_layers
    else:
        # Stream lc layers per grid step (amortizes per-step overhead at small S).
        lc = 8 if size_p <= 512 else (4 if size_p <= 1024 else 1)
        lc = max(1, min(lc, num_layers, _MAX_UNROLL))
        while lc > 1 and footprint(tb, lc, _round_up(num_layers, lc)) > usable:
            lc = max(1, lc // 2)
        while tb > 8 and footprint(tb, lc, _round_up(num_layers, lc)) > usable:
            tb = max(8, _round_up(tb // 2, 8))
        batch_p = _round_up(batch, tb)

    layers_p = _round_up(num_layers, lc)
    n_chunks = layers_p // lc
    n_btiles = batch_p // tb
    needs_mask = layers_p != num_layers

    # --- padding & fusion -----------------------------------------------------
    def pad_w(w):   # [L, size, size] -> [Lp, S, S]
        return jnp.pad(w, ((0, layers_p - num_layers),
                           (0, size_p - size), (0, size_p - size)))

    def pad_b(b):   # [L, size] -> [Lp, S]
        return jnp.pad(b, ((0, layers_p - num_layers), (0, size_p - size)))

    w_fused = jnp.concatenate([pad_w(wg), pad_w(wn), pad_w(wl)], axis=-1)          # [Lp, S, 3S]
    b_fused = jnp.concatenate([pad_b(bg), pad_b(bn), pad_b(bl)], axis=-1)          # [Lp, 3S]
    b_fused = b_fused.astype(jnp.float32)                                          # tiny; keep f32
    x_p = jnp.pad(x, ((0, batch_p - batch), (0, size_p - size)))

    vmem_limit = int(min(max(footprint(tb, lc, layers_p) + (4 << 20), 32 << 20), usable))

    w_reads = 1 if n_chunks == 1 else n_btiles   # resident weights are DMA'd once total
    cost = pl.CostEstimate(
        flops=int(2 * batch_p * size_p * 3 * size_p * num_layers),
        transcendentals=int(batch_p * size_p * num_layers),
        bytes_accessed=int(w_fused.size * w_itemsize * w_reads
                           + b_fused.size * 4
                           + 2 * batch_p * size_p * x_itemsize),
    )

    kernel = functools.partial(
        _highway_kernel, lc=lc, size_p=size_p, num_layers=num_layers,
        n_chunks=n_chunks, needs_mask=needs_mask)

    out = pl.pallas_call(
        kernel,
        out_shape=jax.ShapeDtypeStruct((batch_p, size_p), x.dtype),
        grid_spec=pltpu.PrefetchScalarGridSpec(
            num_scalar_prefetch=0,
            grid=(n_btiles, n_chunks),
            in_specs=[
                pl.BlockSpec((tb, size_p), lambda b, c: (b, 0)),                  # x: one DMA per batch tile
                pl.BlockSpec((lc, size_p, 3 * size_p), lambda b, c: (c, 0, 0)),   # fused weights per chunk
                pl.BlockSpec((layers_p, 3 * size_p), lambda b, c: (0, 0)),        # fused biases, resident
            ],
            out_specs=pl.BlockSpec((tb, size_p), lambda b, c: (b, 0)),
            scratch_shapes=[pltpu.VMEM((tb, size_p), jnp.float32)],
        ),
        compiler_params=pltpu.CompilerParams(
            dimension_semantics=("parallel", "arbitrary"),
            vmem_limit_bytes=vmem_limit,
        ),
        cost_estimate=cost,
    )(x_p, w_fused, b_fused)

    return out[:batch, :size]


def make_params(key, size, num_layers, dtype=jnp.float32):
    """Deterministic init mimicking torch.nn.Linear default U(-1/sqrt(size), 1/sqrt(size))."""
    bound = 1.0 / (size ** 0.5)
    keys = jax.random.split(key, 6)

    def u(k, shape):
        return jax.random.uniform(k, shape, dtype, minval=-bound, maxval=bound)

    # Weights stored pre-transposed: [L, in, out]; biases [L, size].
    wg = u(keys[0], (num_layers, size, size))
    bg = u(keys[1], (num_layers, size))
    wn = u(keys[2], (num_layers, size, size))
    bn = u(keys[3], (num_layers, size))
    wl = u(keys[4], (num_layers, size, size))
    bl = u(keys[5], (num_layers, size))
    return wg, bg, wn, bn, wl, bl


def highway_reference(x, wg, bg, wn, bn, wl, bl):
    """Pure-JAX reference matching the PyTorch forward (f = ReLU)."""
    num_layers = wg.shape[0]
    x = x.astype(jnp.float32)
    for l in range(num_layers):
        gate = jax.nn.sigmoid(x @ wg[l].astype(jnp.float32) + bg[l].astype(jnp.float32))
        nonlinear = jax.nn.relu(x @ wn[l].astype(jnp.float32) + bn[l].astype(jnp.float32))
        linear = x @ wl[l].astype(jnp.float32) + bl[l].astype(jnp.float32)
        x = gate * nonlinear + (1.0 - gate) * linear
    return x


if __name__ == "__main__":
    batch, size, num_layers = 8, 32, 2

    key = jax.random.PRNGKey(0)
    k_x, k_p = jax.random.split(key)
    x = jax.random.normal(k_x, (batch, size), dtype=jnp.float32)
    params = make_params(k_p, size, num_layers)

    # f32 parameter path: must match the reference tightly.
    out = jax.block_until_ready(highway(x, *params))
    ref = highway_reference(x, *params)
    assert out.shape == (batch, size)
    assert jnp.allclose(out, ref, atol=1e-5, rtol=1e-5), "mismatch vs f32 reference"

    # bf16 weight-streaming path: checked against a reference built from
    # bf16-rounded parameters with a looser tolerance (activations are also
    # rounded to bf16 at each MXU input in this mode).
    out_bf16 = jax.block_until_ready(highway(x, *params, param_dtype=jnp.bfloat16))
    bf16_params = tuple(p.astype(jnp.bfloat16).astype(jnp.float32) for p in params)
    ref_bf16 = highway_reference(x, *bf16_params)
    assert jnp.allclose(out_bf16, ref_bf16, atol=5e-2, rtol=5e-2), "mismatch vs bf16 reference"

    print("KERNEL_OK")
</pallas_src>

<mosaic_0001>
module attributes {stable_mosaic.version = 11 : i64} {
  func.func @_highway_kernel(%arg0: i32, %arg1: i32, %arg2: memref<8x128xf32, #tpu.memory_space<vmem>>, %arg3: memref<2x128x384xf32, #tpu.memory_space<vmem>>, %arg4: memref<2x384xf32, #tpu.memory_space<vmem>>, %arg5: memref<8x128xf32, #tpu.memory_space<vmem>>, %arg6: memref<8x128xf32, #tpu.memory_space<vmem>>) attributes {dimension_semantics = [#tpu.dimension_semantics<parallel>, #tpu.dimension_semantics<arbitrary>], iteration_bounds = array<i64: 1, 1>, scalar_prefetch = 0 : i64, scratch_operands = 1 : i64, tpu.core_type = #tpu.core_type<tc>, window_params = [{transform_indices = @transform_0, window_bounds = array<i64: 8, 128>}, {transform_indices = @transform_1, window_bounds = array<i64: 2, 128, 384>}, {pipeline_mode = #tpu.pipeline_mode<synchronous>, transform_indices = @transform_2, window_bounds = array<i64: 2, 384>}, {transform_indices = @transform_3, window_bounds = array<i64: 8, 128>}]} {
    %c0_i32 = arith.constant 0 : i32
    %0 = arith.cmpi eq, %arg1, %c0_i32 : i32
    %1 = arith.extui %0 : i1 to i32
    %c0_i32_0 = arith.constant 0 : i32
    %2 = arith.cmpi ne, %1, %c0_i32_0 : i32
    scf.if %2 {
      %c0_18 = arith.constant 0 : index
      %c0_19 = arith.constant 0 : index
      %45 = vector.load %arg2[%c0_18, %c0_19] : memref<8x128xf32, #tpu.memory_space<vmem>>, vector<8x128xf32>
      %c0_20 = arith.constant 0 : index
      %c0_21 = arith.constant 0 : index
      %46 = vector.load %arg6[%c0_20, %c0_21] : memref<8x128xf32, #tpu.memory_space<vmem>>, vector<8x128xf32>
      tpu.vector_store %arg6[%c0_20, %c0_21], %45 {strides = array<i32>} : memref<8x128xf32, #tpu.memory_space<vmem>>, vector<8x128xf32>,
    } else {
    }
    %c0 = arith.constant 0 : index
    %c0_1 = arith.constant 0 : index
    %3 = vector.load %arg6[%c0, %c0_1] : memref<8x128xf32, #tpu.memory_space<vmem>>, vector<8x128xf32>
    %c0_2 = arith.constant 0 : index
    %c0_3 = arith.constant 0 : index
    %c0_4 = arith.constant 0 : index
    %4 = vector.load %arg3[%c0_2, %c0_3, %c0_4] : memref<2x128x384xf32, #tpu.memory_space<vmem>>, vector<1x128x384xf32>
    %5 = vector.shape_cast %4 : vector<1x128x384xf32> to vector<128x384xf32>
    %c0_5 = arith.constant 0 : index
    %c0_6 = arith.constant 0 : index
    %6 = vector.load %arg4[%c0_5, %c0_6] : memref<2x384xf32, #tpu.memory_space<vmem>>, vector<1x384xf32>
    %cst = arith.constant dense<0.000000e+00> : vector<8x384xf32>
    %7 = tpu.matmul %3, %5, %cst {dimension_numbers = #tpu.dot_dimension_numbers<[1], [0], [0], [1], [0, 0, 1, 1], [], []>} : vector<8x128xf32>, vector<128x384xf32>, vector<8x384xf32> -> vector<8x384xf32>
    %8 = vector.broadcast %6 : vector<1x384xf32> to vector<8x384xf32>
    %9 = arith.addf %7, %8 : vector<8x384xf32>
    %10 = vector.extract_strided_slice %9 {offsets = [0, 0], sizes = [8, 128], strides = [1, 1]} : vector<8x384xf32> to vector<8x128xf32>
    %11 = arith.negf %10 : vector<8x128xf32>
    %12 = math.exp %11 : vector<8x128xf32>
    %cst_7 = arith.constant 1.000000e+00 : f32
    %13 = vector.broadcast %cst_7 : f32 to vector<8x128xf32>
    %14 = arith.addf %13, %12 : vector<8x128xf32>
    %15 = arith.divf %13, %14 : vector<8x128xf32>
    %16 = vector.extract_strided_slice %9 {offsets = [0, 128], sizes = [8, 128], strides = [1, 1]} : vector<8x384xf32> to vector<8x128xf32>
    %cst_8 = arith.constant 0.000000e+00 : f32
    %17 = vector.broadcast %cst_8 : f32 to vector<8x128xf32>
    %18 = arith.maximumf %16, %17 : vector<8x128xf32>
    %19 = vector.extract_strided_slice %9 {offsets = [0, 256], sizes = [8, 128], strides = [1, 1]} : vector<8x384xf32> to vector<8x128xf32>
    %20 = arith.subf %18, %19 : vector<8x128xf32>
    %21 = arith.mulf %15, %20 : vector<8x128xf32>
    %22 = arith.addf %19, %21 : vector<8x128xf32>
    %c1 = arith.constant 1 : index
    %c0_9 = arith.constant 0 : index
    %c0_10 = arith.constant 0 : index
    %23 = vector.load %arg3[%c1, %c0_9, %c0_10] : memref<2x128x384xf32, #tpu.memory_space<vmem>>, vector<1x128x384xf32>
    %24 = vector.shape_cast %23 : vector<1x128x384xf32> to vector<128x384xf32>
    %c1_11 = arith.constant 1 : index
    %c0_12 = arith.constant 0 : index
    %25 = vector.load %arg4[%c1_11, %c0_12] : memref<2x384xf32, #tpu.memory_space<vmem>>, vector<1x384xf32>
    %cst_13 = arith.constant dense<0.000000e+00> : vector<8x384xf32>
    %26 = tpu.matmul %22, %24, %cst_13 {dimension_numbers = #tpu.dot_dimension_numbers<[1], [0], [0], [1], [0, 0, 1, 1], [], []>} : vector<8x128xf32>, vector<128x384xf32>, vector<8x384xf32> -> vector<8x384xf32>
    %27 = vector.broadcast %25 : vector<1x384xf32> to vector<8x384xf32>
    %28 = arith.addf %26, %27 : vector<8x384xf32>
    %29 = vector.extract_strided_slice %28 {offsets = [0, 0], sizes = [8, 128], strides = [1, 1]} : vector<8x384xf32> to vector<8x128xf32>
    %30 = arith.negf %29 : vector<8x128xf32>
    %31 = math.exp %30 : vector<8x128xf32>
    %cst_14 = arith.constant 1.000000e+00 : f32
    %32 = vector.broadcast %cst_14 : f32 to vector<8x128xf32>
    %33 = arith.addf %32, %31 : vector<8x128xf32>
    %34 = arith.divf %32, %33 : vector<8x128xf32>
    %35 = vector.extract_strided_slice %28 {offsets = [0, 128], sizes = [8, 128], strides = [1, 1]} : vector<8x384xf32> to vector<8x128xf32>
    %cst_15 = arith.constant 0.000000e+00 : f32
    %36 = vector.broadcast %cst_15 : f32 to vector<8x128xf32>
    %37 = arith.maximumf %35, %36 : vector<8x128xf32>
    %38 = vector.extract_strided_slice %28 {offsets = [0, 256], sizes = [8, 128], strides = [1, 1]} : vector<8x384xf32> to vector<8x128xf32>
    %39 = arith.subf %37, %38 : vector<8x128xf32>
    %40 = arith.mulf %34, %39 : vector<8x128xf32>
    %41 = arith.addf %38, %40 : vector<8x128xf32>
    %c0_i32_16 = arith.constant 0 : i32
    %42 = arith.cmpi eq, %arg1, %c0_i32_16 : i32
    %43 = arith.extui %42 : i1 to i32
    %c0_i32_17 = arith.constant 0 : i32
    %44 = arith.cmpi ne, %43, %c0_i32_17 : i32
    scf.if %44 {
      %c0_18 = arith.constant 0 : index
      %c0_19 = arith.constant 0 : index
      %45 = vector.load %arg5[%c0_18, %c0_19] : memref<8x128xf32, #tpu.memory_space<vmem>>, vector<8x128xf32>
      tpu.vector_store %arg5[%c0_18, %c0_19], %41 {strides = array<i32>} : memref<8x128xf32, #tpu.memory_space<vmem>>, vector<8x128xf32>,
    } else {
    }
    return
  }
  func.func @transform_0(%arg0: i32, %arg1: i32) -> (i32, i32) {
    %c0_i32 = arith.constant 0 : i32
    %c0_i32_0 = arith.constant 0 : i32
    return %arg0, %c0_i32 : i32, i32
  }
  func.func @transform_1(%arg0: i32, %arg1: i32) -> (i32, i32, i32) {
    %c0_i32 = arith.constant 0 : i32
    %c0_i32_0 = arith.constant 0 : i32
    %c0_i32_1 = arith.constant 0 : i32
    return %arg1, %c0_i32, %c0_i32_0 : i32, i32, i32
  }
  func.func @transform_2(%arg0: i32, %arg1: i32) -> (i32, i32) {
    %c0_i32 = arith.constant 0 : i32
    %c0_i32_0 = arith.constant 0 : i32
    %c0_i32_1 = arith.constant 0 : i32
    return %c0_i32, %c0_i32_0 : i32, i32
  }
  func.func @transform_3(%arg0: i32, %arg1: i32) -> (i32, i32) {
    %c0_i32 = arith.constant 0 : i32
    %c0_i32_0 = arith.constant 0 : i32
    return %arg0, %c0_i32 : i32, i32
  }
}

</mosaic_0001>

<llo_original>
// kernel: tpu_custom_call.1
$region0: #{tpu_custom_call.1}
  #allocation0 [shape = 'u32[]', space=smem, size = 0x4, offset = 0x4, fixed_abs, tag = 'smem constant byte address 0x4 - core index']
  #allocation1 [shape = 'u32[144,128]{1,0:T(1,128)}', space=vmem, size = 0x12000, scoped, tag = 'internal scratch']
  #allocation2 [shape = 'f32[8,128]{1,0:T(8,128)}', space=vmem, size = 0x1000, scoped, tag = 'scratch operand']
  %s0 = inlined_call_operand.hbm [shape: f32[8,128], index: 0, kind: input, shape index: {}]
  %s1 = inlined_call_operand.hbm [shape: f32[2,128,384], index: 1, kind: input, shape index: {}]
  %s2 = inlined_call_operand.vmem [shape: f32[2,384], index: 2, kind: input, shape index: {}]
  %s3 = inlined_call_operand.hbm [shape: f32[8,128], index: 3, kind: output, shape index: {}]
  %s4 = sld [smem:[#allocation0]]
  $region38: #{tpu_custom_call.1} parent=0
    _
  %s6 = ssub.s32 1, %s4
  %s7 = scalar_select 0, %s6, %s4
  $region1: #{tpu_custom_call.1} parent=0
    #allocation3 [shape = 'u8[4096]{0}', space=vmem, size = 0x1000, scoped, tag = 'input window, operand 0, single buffered']
    #allocation4 [shape = 's32[1]{0}', space=sflag, size = 0x4, scoped, tag = 'scoped memory for tpu_custom_call.1']
    #allocation5 [shape = 's32[1]{0}', space=sflag, size = 0x4, scoped, tag = 'scoped memory for tpu_custom_call.1']
    #allocation6 [shape = 'u8[393216]{0}', space=vmem, size = 0x60000, scoped, tag = 'input window, operand 1, single buffered']
    #allocation7 [shape = 's32[1]{0}', space=sflag, size = 0x4, scoped, tag = 'scoped memory for tpu_custom_call.1']
    #allocation8 [shape = 'u8[4096]{0}', space=vmem, size = 0x1000, scoped, tag = 'output window, operand 0, single buffered']
    %8 = vsyncpa [#allocation4], 0
    %9 = vsyncpa [#allocation7], 0
    %10 = vsyncpa [#allocation5], 0
    // Predicated region
    $region2: #{tpu_custom_call.1} parent=1 // pred_check
      _
    $region3: #{tpu_custom_call.1} parent=1 // pred_check_branch
      %12 = sbr.rel (0) target = $region5
    $region4: #{tpu_custom_call.1} parent=1 // pred_region
      %s14 = ssub.s32 128, 128
      %15 = vsyncadd [#allocation4], %s14
      %s17 = sshll.u32 [#allocation3], 4
      %s18 = int_to_ptr.vmem [resolvable:$true] %s17
      %20 = dma.hbm_to_vmem [thread:$0]  %s0, 128, %s18, [#allocation4]
    $region5: #{tpu_custom_call.1} parent=1 // pred_fallthru
      _
    // Predicated region
    $region6: #{tpu_custom_call.1} parent=1 // pred_check
      _
    $region7: #{tpu_custom_call.1} parent=1 // pred_check_branch
      %22 = sbr.rel (0) target = $region9
    $region8: #{tpu_custom_call.1} parent=1 // pred_region
      %s24 = ssub.s32 12288, 12288
      %25 = vsyncadd [#allocation7], %s24
      %s26 = sshll.u32 [#allocation6], 4
      %s27 = int_to_ptr.vmem [resolvable:$true] %s26
      %32 = dma.hbm_to_vmem [thread:$0]  %s1, 12288, %s27, [#allocation7], 384, 384, 24
    $region9: #{tpu_custom_call.1} parent=1 // pred_fallthru
      _
    // Predicated region
    $region10: #{tpu_custom_call.1} parent=1 // pred_check
      _
    $region11: #{tpu_custom_call.1} parent=1 // pred_check_branch
      %34 = sbr.rel (0) target = $region13
    $region12: #{tpu_custom_call.1} parent=1 // pred_region
      _
    $region13: #{tpu_custom_call.1} parent=1 // pred_fallthru
      _
    // Predicated region
    $region14: #{tpu_custom_call.1} parent=1 // pred_check
      _
    $region15: #{tpu_custom_call.1} parent=1 // pred_check_branch
      %36 = sbr.rel (0) target = $region17
    $region16: #{tpu_custom_call.1} parent=1 // pred_region
      %37 = dma.done [#allocation4], 128
    $region17: #{tpu_custom_call.1} parent=1 // pred_fallthru
      _
    // Predicated region
    $region18: #{tpu_custom_call.1} parent=1 // pred_check
      _
    $region19: #{tpu_custom_call.1} parent=1 // pred_check_branch
      %39 = sbr.rel (0) target = $region21
    $region20: #{tpu_custom_call.1} parent=1 // pred_region
      %40 = dma.done [#allocation7], 12288
    $region21: #{tpu_custom_call.1} parent=1 // pred_fallthru
      _
    %p41 = scmp.eq.s32.totalorder 0, 0
    // Predicated region
    $region22: #{tpu_custom_call.1} parent=1 // pred_check
      %p42 = pneg %p41
    $region23: #{tpu_custom_call.1} parent=1 // pred_check_branch
      %44 = sbr.rel (%p42) target = $region25
    $region24: #{tpu_custom_call.1} parent=1 // pred_region
      %v45 = vld [vmem:[#allocation3] sm:$0xff]
      %46 = vst [vmem:[#allocation2] sm:$0xff] %v45
    $region25: #{tpu_custom_call.1} parent=1 // pred_fallthru
      _
    %v47 = vld [vmem:[#allocation2] sm:$0xff]
    %v48 = vld [vmem:[#allocation6] sm:$0xff]
    %v49 = vld [vmem:[#allocation6 + $0x8] sm:$0xff]
    %v50 = vld [vmem:[#allocation6 + $0x10] sm:$0xff]
    %v51 = vld [vmem:[#allocation6 + $0x18] sm:$0xff]
    %v52 = vld [vmem:[#allocation6 + $0x20] sm:$0xff]
    %v53 = vld [vmem:[#allocation6 + $0x28] sm:$0xff]
    %v54 = vld [vmem:[#allocation6 + $0x30] sm:$0xff]
    %v55 = vld [vmem:[#allocation6 + $0x38] sm:$0xff]
    %v56 = vld [vmem:[#allocation6 + $0x40] sm:$0xff]
    %v57 = vld [vmem:[#allocation6 + $0x48] sm:$0xff]
    %v58 = vld [vmem:[#allocation6 + $0x50] sm:$0xff]
    %v59 = vld [vmem:[#allocation6 + $0x58] sm:$0xff]
    %v60 = vld [vmem:[#allocation6 + $0x60] sm:$0xff]
    %v61 = vld [vmem:[#allocation6 + $0x68] sm:$0xff]
    %v62 = vld [vmem:[#allocation6 + $0x70] sm:$0xff]
    %v63 = vld [vmem:[#allocation6 + $0x78] sm:$0xff]
    %v64 = vld [vmem:[#allocation6 + $0x80] sm:$0xff]
    %v65 = vld [vmem:[#allocation6 + $0x88] sm:$0xff]
    %v66 = vld [vmem:[#allocation6 + $0x90] sm:$0xff]
    %v67 = vld [vmem:[#allocation6 + $0x98] sm:$0xff]
    %v68 = vld [vmem:[#allocation6 + $0xa0] sm:$0xff]
    %v69 = vld [vmem:[#allocation6 + $0xa8] sm:$0xff]
    %v70 = vld [vmem:[#allocation6 + $0xb0] sm:$0xff]
    %v71 = vld [vmem:[#allocation6 + $0xb8] sm:$0xff]
    %v72 = vld [vmem:[#allocation6 + $0xc0] sm:$0xff]
    %v73 = vld [vmem:[#allocation6 + $0xc8] sm:$0xff]
    %v74 = vld [vmem:[#allocation6 + $0xd0] sm:$0xff]
    %v75 = vld [vmem:[#allocation6 + $0xd8] sm:$0xff]
    %v76 = vld [vmem:[#allocation6 + $0xe0] sm:$0xff]
    %v77 = vld [vmem:[#allocation6 + $0xe8] sm:$0xff]
    %v78 = vld [vmem:[#allocation6 + $0xf0] sm:$0xff]
    %v79 = vld [vmem:[#allocation6 + $0xf8] sm:$0xff]
    %v80 = vld [vmem:[#allocation6 + $0x100] sm:$0xff]
    %v81 = vld [vmem:[#allocation6 + $0x108] sm:$0xff]
    %v82 = vld [vmem:[#allocation6 + $0x110] sm:$0xff]
    %v83 = vld [vmem:[#allocation6 + $0x118] sm:$0xff]
    %v84 = vld [vmem:[#allocation6 + $0x120] sm:$0xff]
    %v85 = vld [vmem:[#allocation6 + $0x128] sm:$0xff]
    %v86 = vld [vmem:[#allocation6 + $0x130] sm:$0xff]
    %v87 = vld [vmem:[#allocation6 + $0x138] sm:$0xff]
    %v88 = vld [vmem:[#allocation6 + $0x140] sm:$0xff]
    %v89 = vld [vmem:[#allocation6 + $0x148] sm:$0xff]
    %v90 = vld [vmem:[#allocation6 + $0x150] sm:$0xff]
    %v91 = vld [vmem:[#allocation6 + $0x158] sm:$0xff]
    %v92 = vld [vmem:[#allocation6 + $0x160] sm:$0xff]
    %v93 = vld [vmem:[#allocation6 + $0x168] sm:$0xff]
    %v94 = vld [vmem:[#allocation6 + $0x170] sm:$0xff]
    %v95 = vld [vmem:[#allocation6 + $0x178] sm:$0xff]
    %v96 = vld [vmem:[%s2] ss:$2 sm:$0x7]
    %v98 = vlaneseq
    %v99 = vshrl.u32 %v98, 7
    %v100 = vsub.s32 0, %v99
    %v101 = vrot.slane %v96, %v100
    %v102 = vlaneseq
    %v103 = vshrl.u32 %v102, 7
    %v104 = vsub.s32 1, %v103
    %v105 = vrot.slane %v96, %v104
    %v106 = vlaneseq
    %v107 = vshrl.u32 %v106, 7
    %v108 = vsub.s32 2, %v107
    %v109 = vrot.slane %v96, %v108
    %113 = vmatprep.subr.mxu0 %v49
    %114 = vmatpush1.msra.mxu0 %v48
    %115 = vmatprep.subr.mxu0 %v52
    %116 = vmatpush1.msra.mxu0 %v51
    %117 = vmatprep.subr.mxu0 %v55
    %118 = vmatpush1.msra.mxu0 %v54
    %119 = vmatprep.subr.mxu0 %v58
    %120 = vmatpush1.msra.mxu0 %v57
    %121 = vmatprep.subr.mxu0 %v61
    %122 = vmatpush1.msra.mxu0 %v60
    %123 = vmatprep.subr.mxu0 %v64
    %124 = vmatpush1.msra.mxu0 %v63
    %125 = vmatprep.subr.mxu0 %v67
    %126 = vmatpush1.msra.mxu0 %v66
    %127 = vmatprep.subr.mxu0 %v70
    %128 = vmatpush1.msra.mxu0 %v69
    %129 = vmatprep.subr.mxu0 %v73
    %130 = vmatpush1.msra.mxu0 %v72
    %131 = vmatprep.subr.mxu0 %v76
    %132 = vmatpush1.msra.mxu0 %v75
    %133 = vmatprep.subr.mxu0 %v79
    %134 = vmatpush1.msra.mxu0 %v78
    %135 = vmatprep.subr.mxu0 %v82
    %136 = vmatpush1.msra.mxu0 %v81
    %137 = vmatprep.subr.mxu0 %v85
    %138 = vmatpush1.msra.mxu0 %v84
    %139 = vmatprep.subr.mxu0 %v88
    %140 = vmatpush1.msra.mxu0 %v87
    %141 = vmatprep.subr.mxu0 %v91
    %142 = vmatpush1.msra.mxu0 %v90
    %143 = vmatprep.subr.mxu0 %v94
    %144 = vmatpush1.msra.mxu0 %v93
    %145 = vmatprep.subr.mxu0 0.0
    %146 = vmatpush1.msra.mxu0 0.0
    %147 = vmatprep.subr.mxu0 0.0
    %148 = vmatpush1.msra.mxu0 0.0
    %149 = vmatprep.subr.mxu0 0.0
    %150 = vmatpush1.msra.mxu0 0.0
    %151 = vmatprep.subr.mxu0 0.0
    %152 = vmatpush1.msra.mxu0 0.0
    %153 = vmatprep.subr.mxu0 0.0
    %154 = vmatpush1.msra.mxu0 0.0
    %155 = vmatprep.subr.mxu0 0.0
    %156 = vmatpush1.msra.mxu0 0.0
    %157 = vmatprep.subr.mxu0 0.0
    %158 = vmatpush1.msra.mxu0 0.0
    %159 = vmatprep.subr.mxu0 0.0
    %160 = vmatpush1.msra.mxu0 0.0
    %161 = vmatprep.subr.mxu0 0.0
    %162 = vmatpush1.msra.mxu0 0.0
    %163 = vmatprep.subr.mxu0 0.0
    %164 = vmatpush1.msra.mxu0 0.0
    %165 = vmatprep.subr.mxu0 0.0
    %166 = vmatpush1.msra.mxu0 0.0
    %167 = vmatprep.subr.mxu0 0.0
    %168 = vmatpush1.msra.mxu0 0.0
    %169 = vmatprep.subr.mxu0 0.0
    %170 = vmatpush1.msra.mxu0 0.0
    %171 = vmatprep.subr.mxu0 0.0
    %172 = vmatpush1.msra.mxu0 0.0
    %173 = vmatprep.subr.mxu0 0.0
    %174 = vmatpush1.msra.mxu0 0.0
    %175 = vmatprep.subr.mxu0 0.0
    %176 = vmatpush1.msra.mxu0 0.0
    %177 = vmatprep.mubr.f32.mxu0 0.0
    %178 = vmatmul.mubr.f32.gmra.mrb[0].mxu0 %v47
    %v179 = vpop.f32.mrb[0].mxu0
    %v180 = vadd.f32 %v101, %v179
    %v181 = vpop.f32.mrb[0].mxu0
    %v182 = vadd.f32 %v105, %v181
    %183 = vdwg.mxu0
    %184 = vmatprep.subr.mxu0 0.0
    %185 = vmatpush1.msra.mxu0 %v50
    %186 = vmatprep.subr.mxu0 0.0
    %187 = vmatpush1.msra.mxu0 %v53
    %188 = vmatprep.subr.mxu0 0.0
    %189 = vmatpush1.msra.mxu0 %v56
    %190 = vmatprep.subr.mxu0 0.0
    %191 = vmatpush1.msra.mxu0 %v59
    %192 = vmatprep.subr.mxu0 0.0
    %193 = vmatpush1.msra.mxu0 %v62
    %194 = vmatprep.subr.mxu0 0.0
    %195 = vmatpush1.msra.mxu0 %v65
    %196 = vmatprep.subr.mxu0 0.0
    %197 = vmatpush1.msra.mxu0 %v68
    %198 = vmatprep.subr.mxu0 0.0
    %199 = vmatpush1.msra.mxu0 %v71
    %200 = vmatprep.subr.mxu0 0.0
    %201 = vmatpush1.msra.mxu0 %v74
    %202 = vmatprep.subr.mxu0 0.0
    %203 = vmatpush1.msra.mxu0 %v77
    %204 = vmatprep.subr.mxu0 0.0
    %205 = vmatpush1.msra.mxu0 %v80
    %206 = vmatprep.subr.mxu0 0.0
    %207 = vmatpush1.msra.mxu0 %v83
    %208 = vmatprep.subr.mxu0 0.0
    %209 = vmatpush1.msra.mxu0 %v86
    %210 = vmatprep.subr.mxu0 0.0
    %211 = vmatpush1.msra.mxu0 %v89
    %212 = vmatprep.subr.mxu0 0.0
    %213 = vmatpush1.msra.mxu0 %v92
    %214 = vmatprep.subr.mxu0 0.0
    %215 = vmatpush1.msra.mxu0 %v95
    %216 = vmatprep.subr.mxu0 0.0
    %217 = vmatpush1.msra.mxu0 0.0
    %218 = vmatprep.subr.mxu0 0.0
    %219 = vmatpush1.msra.mxu0 0.0
    %220 = vmatprep.subr.mxu0 0.0
    %221 = vmatpush1.msra.mxu0 0.0
    %222 = vmatprep.subr.mxu0 0.0
    %223 = vmatpush1.msra.mxu0 0.0
    %224 = vmatprep.subr.mxu0 0.0
    %225 = vmatpush1.msra.mxu0 0.0
    %226 = vmatprep.subr.mxu0 0.0
    %227 = vmatpush1.msra.mxu0 0.0
    %228 = vmatprep.subr.mxu0 0.0
    %229 = vmatpush1.msra.mxu0 0.0
    %230 = vmatprep.subr.mxu0 0.0
    %231 = vmatpush1.msra.mxu0 0.0
    %232 = vmatprep.subr.mxu0 0.0
    %233 = vmatpush1.msra.mxu0 0.0
    %234 = vmatprep.subr.mxu0 0.0
    %235 = vmatpush1.msra.mxu0 0.0
    %236 = vmatprep.subr.mxu0 0.0
    %237 = vmatpush1.msra.mxu0 0.0
    %238 = vmatprep.subr.mxu0 0.0
    %239 = vmatpush1.msra.mxu0 0.0
    %240 = vmatprep.subr.mxu0 0.0
    %241 = vmatpush1.msra.mxu0 0.0
    %242 = vmatprep.subr.mxu0 0.0
    %243 = vmatpush1.msra.mxu0 0.0
    %244 = vmatprep.subr.mxu0 0.0
    %245 = vmatpush1.msra.mxu0 0.0
    %246 = vmatprep.subr.mxu0 0.0
    %247 = vmatpush1.msra.mxu0 0.0
    %248 = vmatprep.mubr.f32.mxu0 0.0
    %249 = vmatmul.mubr.f32.gmra.mrb[0].mxu0 %v47
    %v250 = vpop.f32.mrb[0].mxu0
    %v251 = vadd.f32 %v109, %v250
    %v252 = vpop.f32.mrb[0].mxu0
    %253 = vdwg.mxu0
    %v254 = vxor.u32 %v180, 2147483648
    %v255 = vmul.f32 %v254, 1.442695
    %v256 = vpow.pop %v255
    %v257 = vadd.f32 %v256, 1.0
    %v258 = vrcp.pop %v257
    %v259 = vmul.f32 1.0, %v258
    %v260 = vmax.f32 %v182, 0.0
    %v261 = vsub.f32 %v260, %v251
    %v262 = vmul.f32 %v259, %v261
    %v263 = vadd.f32 %v251, %v262
    %s264 = scalar_lea.vmem [#allocation6], 384
    %v265 = vld [vmem:[%s264] sm:$0xff]
    %v266 = vld [vmem:[%s264 + $0x8] sm:$0xff]
    %v267 = vld [vmem:[%s264 + $0x10] sm:$0xff]
    %v268 = vld [vmem:[%s264 + $0x18] sm:$0xff]
    %v269 = vld [vmem:[%s264 + $0x20] sm:$0xff]
    %v270 = vld [vmem:[%s264 + $0x28] sm:$0xff]
    %v271 = vld [vmem:[%s264 + $0x30] sm:$0xff]
    %v272 = vld [vmem:[%s264 + $0x38] sm:$0xff]
    %v273 = vld [vmem:[%s264 + $0x40] sm:$0xff]
    %v274 = vld [vmem:[%s264 + $0x48] sm:$0xff]
    %v275 = vld [vmem:[%s264 + $0x50] sm:$0xff]
    %v276 = vld [vmem:[%s264 + $0x58] sm:$0xff]
    %v277 = vld [vmem:[%s264 + $0x60] sm:$0xff]
    %v278 = vld [vmem:[%s264 + $0x68] sm:$0xff]
    %v279 = vld [vmem:[%s264 + $0x70] sm:$0xff]
    %v280 = vld [vmem:[%s264 + $0x78] sm:$0xff]
    %v281 = vld [vmem:[%s264 + $0x80] sm:$0xff]
    %v282 = vld [vmem:[%s264 + $0x88] sm:$0xff]
    %v283 = vld [vmem:[%s264 + $0x90] sm:$0xff]
    %v284 = vld [vmem:[%s264 + $0x98] sm:$0xff]
    %v285 = vld [vmem:[%s264 + $0xa0] sm:$0xff]
    %v286 = vld [vmem:[%s264 + $0xa8] sm:$0xff]
    %v287 = vld [vmem:[%s264 + $0xb0] sm:$0xff]
    %v288 = vld [vmem:[%s264 + $0xb8] sm:$0xff]
    %v289 = vld [vmem:[%s264 + $0xc0] sm:$0xff]
    %v290 = vld [vmem:[%s264 + $0xc8] sm:$0xff]
    %v291 = vld [vmem:[%s264 + $0xd0] sm:$0xff]
    %v292 = vld [vmem:[%s264 + $0xd8] sm:$0xff]
    %v293 = vld [vmem:[%s264 + $0xe0] sm:$0xff]
    %v294 = vld [vmem:[%s264 + $0xe8] sm:$0xff]
    %v295 = vld [vmem:[%s264 + $0xf0] sm:$0xff]
    %v296 = vld [vmem:[%s264 + $0xf8] sm:$0xff]
    %v297 = vld [vmem:[%s264 + $0x100] sm:$0xff]
    %v298 = vld [vmem:[%s264 + $0x108] sm:$0xff]
    %v299 = vld [vmem:[%s264 + $0x110] sm:$0xff]
    %v300 = vld [vmem:[%s264 + $0x118] sm:$0xff]
    %v301 = vld [vmem:[%s264 + $0x120] sm:$0xff]
    %v302 = vld [vmem:[%s264 + $0x128] sm:$0xff]
    %v303 = vld [vmem:[%s264 + $0x130] sm:$0xff]
    %v304 = vld [vmem:[%s264 + $0x138] sm:$0xff]
    %v305 = vld [vmem:[%s264 + $0x140] sm:$0xff]
    %v306 = vld [vmem:[%s264 + $0x148] sm:$0xff]
    %v307 = vld [vmem:[%s264 + $0x150] sm:$0xff]
    %v308 = vld [vmem:[%s264 + $0x158] sm:$0xff]
    %v309 = vld [vmem:[%s264 + $0x160] sm:$0xff]
    %v310 = vld [vmem:[%s264 + $0x168] sm:$0xff]
    %v311 = vld [vmem:[%s264 + $0x170] sm:$0xff]
    %v312 = vld [vmem:[%s264 + $0x178] sm:$0xff]
    %s313 = scalar_lea.vmem %s2, 1
    %v314 = vld [vmem:[%s313] ss:$2 sm:$0x7]
    %v316 = vlaneseq
    %v317 = vshrl.u32 %v316, 7
    %v318 = vsub.s32 0, %v317
    %v319 = vrot.slane %v314, %v318
    %v320 = vlaneseq
    %v321 = vshrl.u32 %v320, 7
    %v322 = vsub.s32 1, %v321
    %v323 = vrot.slane %v314, %v322
    %v324 = vlaneseq
    %v325 = vshrl.u32 %v324, 7
    %v326 = vsub.s32 2, %v325
    %v327 = vrot.slane %v314, %v326
    %331 = vmatprep.subr.mxu0 %v266
    %332 = vmatpush1.msra.mxu0 %v265
    %333 = vmatprep.subr.mxu0 %v269
    %334 = vmatpush1.msra.mxu0 %v268
    %335 = vmatprep.subr.mxu0 %v272
    %336 = vmatpush1.msra.mxu0 %v271
    %337 = vmatprep.subr.mxu0 %v275
    %338 = vmatpush1.msra.mxu0 %v274
    %339 = vmatprep.subr.mxu0 %v278
    %340 = vmatpush1.msra.mxu0 %v277
    %341 = vmatprep.subr.mxu0 %v281
    %342 = vmatpush1.msra.mxu0 %v280
    %343 = vmatprep.subr.mxu0 %v284
    %344 = vmatpush1.msra.mxu0 %v283
    %345 = vmatprep.subr.mxu0 %v287
    %346 = vmatpush1.msra.mxu0 %v286
    %347 = vmatprep.subr.mxu0 %v290
    %348 = vmatpush1.msra.mxu0 %v289
    %349 = vmatprep.subr.mxu0 %v293
    %350 = vmatpush1.msra.mxu0 %v292
    %351 = vmatprep.subr.mxu0 %v296
    %352 = vmatpush1.msra.mxu0 %v295
    %353 = vmatprep.subr.mxu0 %v299
    %354 = vmatpush1.msra.mxu0 %v298
    %355 = vmatprep.subr.mxu0 %v302
    %356 = vmatpush1.msra.mxu0 %v301
    %357 = vmatprep.subr.mxu0 %v305
    %358 = vmatpush1.msra.mxu0 %v304
    %359 = vmatprep.subr.mxu0 %v308
    %360 = vmatpush1.msra.mxu0 %v307
    %361 = vmatprep.subr.mxu0 %v311
    %362 = vmatpush1.msra.mxu0 %v310
    %363 = vmatprep.subr.mxu0 0.0
    %364 = vmatpush1.msra.mxu0 0.0
    %365 = vmatprep.subr.mxu0 0.0
    %366 = vmatpush1.msra.mxu0 0.0
    %367 = vmatprep.subr.mxu0 0.0
    %368 = vmatpush1.msra.mxu0 0.0
    %369 = vmatprep.subr.mxu0 0.0
    %370 = vmatpush1.msra.mxu0 0.0
    %371 = vmatprep.subr.mxu0 0.0
    %372 = vmatpush1.msra.mxu0 0.0
    %373 = vmatprep.subr.mxu0 0.0
    %374 = vmatpush1.msra.mxu0 0.0
    %375 = vmatprep.subr.mxu0 0.0
    %376 = vmatpush1.msra.mxu0 0.0
    %377 = vmatprep.subr.mxu0 0.0
    %378 = vmatpush1.msra.mxu0 0.0
    %379 = vmatprep.subr.mxu0 0.0
    %380 = vmatpush1.msra.mxu0 0.0
    %381 = vmatprep.subr.mxu0 0.0
    %382 = vmatpush1.msra.mxu0 0.0
    %383 = vmatprep.subr.mxu0 0.0
    %384 = vmatpush1.msra.mxu0 0.0
    %385 = vmatprep.subr.mxu0 0.0
    %386 = vmatpush1.msra.mxu0 0.0
    %387 = vmatprep.subr.mxu0 0.0
    %388 = vmatpush1.msra.mxu0 0.0
    %389 = vmatprep.subr.mxu0 0.0
    %390 = vmatpush1.msra.mxu0 0.0
    %391 = vmatprep.subr.mxu0 0.0
    %392 = vmatpush1.msra.mxu0 0.0
    %393 = vmatprep.subr.mxu0 0.0
    %394 = vmatpush1.msra.mxu0 0.0
    %395 = vmatprep.mubr.f32.mxu0 0.0
    %396 = vmatmul.mubr.f32.gmra.mrb[0].mxu0 %v263
    %v397 = vpop.f32.mrb[0].mxu0
    %v398 = vadd.f32 %v319, %v397
    %v399 = vpop.f32.mrb[0].mxu0
    %v400 = vadd.f32 %v323, %v399
    %401 = vdwg.mxu0
    %402 = vmatprep.subr.mxu0 0.0
    %403 = vmatpush1.msra.mxu0 %v267
    %404 = vmatprep.subr.mxu0 0.0
    %405 = vmatpush1.msra.mxu0 %v270
    %406 = vmatprep.subr.mxu0 0.0
    %407 = vmatpush1.msra.mxu0 %v273
    %408 = vmatprep.subr.mxu0 0.0
    %409 = vmatpush1.msra.mxu0 %v276
    %410 = vmatprep.subr.mxu0 0.0
    %411 = vmatpush1.msra.mxu0 %v279
    %412 = vmatprep.subr.mxu0 0.0
    %413 = vmatpush1.msra.mxu0 %v282
    %414 = vmatprep.subr.mxu0 0.0
    %415 = vmatpush1.msra.mxu0 %v285
    %416 = vmatprep.subr.mxu0 0.0
    %417 = vmatpush1.msra.mxu0 %v288
    %418 = vmatprep.subr.mxu0 0.0
    %419 = vmatpush1.msra.mxu0 %v291
    %420 = vmatprep.subr.mxu0 0.0
    %421 = vmatpush1.msra.mxu0 %v294
    %422 = vmatprep.subr.mxu0 0.0
    %423 = vmatpush1.msra.mxu0 %v297
    %424 = vmatprep.subr.mxu0 0.0
    %425 = vmatpush1.msra.mxu0 %v300
    %426 = vmatprep.subr.mxu0 0.0
    %427 = vmatpush1.msra.mxu0 %v303
    %428 = vmatprep.subr.mxu0 0.0
    %429 = vmatpush1.msra.mxu0 %v306
    %430 = vmatprep.subr.mxu0 0.0
    %431 = vmatpush1.msra.mxu0 %v309
    %432 = vmatprep.subr.mxu0 0.0
    %433 = vmatpush1.msra.mxu0 %v312
    %434 = vmatprep.subr.mxu0 0.0
    %435 = vmatpush1.msra.mxu0 0.0
    %436 = vmatprep.subr.mxu0 0.0
    %437 = vmatpush1.msra.mxu0 0.0
    %438 = vmatprep.subr.mxu0 0.0
    %439 = vmatpush1.msra.mxu0 0.0
    %440 = vmatprep.subr.mxu0 0.0
    %441 = vmatpush1.msra.mxu0 0.0
    %442 = vmatprep.subr.mxu0 0.0
    %443 = vmatpush1.msra.mxu0 0.0
    %444 = vmatprep.subr.mxu0 0.0
    %445 = vmatpush1.msra.mxu0 0.0
    %446 = vmatprep.subr.mxu0 0.0
    %447 = vmatpush1.msra.mxu0 0.0
    %448 = vmatprep.subr.mxu0 0.0
    %449 = vmatpush1.msra.mxu0 0.0
    %450 = vmatprep.subr.mxu0 0.0
    %451 = vmatpush1.msra.mxu0 0.0
    %452 = vmatprep.subr.mxu0 0.0
    %453 = vmatpush1.msra.mxu0 0.0
    %454 = vmatprep.subr.mxu0 0.0
    %455 = vmatpush1.msra.mxu0 0.0
    %456 = vmatprep.subr.mxu0 0.0
    %457 = vmatpush1.msra.mxu0 0.0
    %458 = vmatprep.subr.mxu0 0.0
    %459 = vmatpush1.msra.mxu0 0.0
    %460 = vmatprep.subr.mxu0 0.0
    %461 = vmatpush1.msra.mxu0 0.0
    %462 = vmatprep.subr.mxu0 0.0
    %463 = vmatpush1.msra.mxu0 0.0
    %464 = vmatprep.subr.mxu0 0.0
    %465 = vmatpush1.msra.mxu0 0.0
    %466 = vmatprep.mubr.f32.mxu0 0.0
    %467 = vmatmul.mubr.f32.gmra.mrb[0].mxu0 %v263
    %v468 = vpop.f32.mrb[0].mxu0
    %v469 = vadd.f32 %v327, %v468
    %v470 = vpop.f32.mrb[0].mxu0
    %471 = vdwg.mxu0
    %v472 = vxor.u32 %v398, 2147483648
    %v473 = vmul.f32 %v472, 1.442695
    %v474 = vpow.pop %v473
    %v475 = vadd.f32 %v474, 1.0
    %v476 = vrcp.pop %v475
    %v477 = vmul.f32 1.0, %v476
    %v478 = vmax.f32 %v400, 0.0
    %v479 = vsub.f32 %v478, %v469
    %v480 = vmul.f32 %v477, %v479
    %v481 = vadd.f32 %v469, %v480
    // Predicated region
    $region26: #{tpu_custom_call.1} parent=1 // pred_check
      %p482 = pneg %p41
    $region27: #{tpu_custom_call.1} parent=1 // pred_check_branch
      %484 = sbr.rel (%p482) target = $region29
    $region28: #{tpu_custom_call.1} parent=1 // pred_region
      %485 = vst [vmem:[#allocation8] sm:$0xff] %v481
    $region29: #{tpu_custom_call.1} parent=1 // pred_fallthru
      _
    // Predicated region
    $region30: #{tpu_custom_call.1} parent=1 // pred_check
      _
    $region31: #{tpu_custom_call.1} parent=1 // pred_check_branch
      %487 = sbr.rel (0) target = $region33
    $region32: #{tpu_custom_call.1} parent=1 // pred_region
      %s489 = ssub.s32 128, 128
      %490 = vsyncadd [#allocation5], %s489
      %s492 = sshll.u32 [#allocation8], 4
      %s493 = int_to_ptr.vmem [resolvable:$true] %s492
      %495 = dma.vmem_to_hbm [thread:$0]  %s493, 128, %s3, [#allocation5]
    $region33: #{tpu_custom_call.1} parent=1 // pred_fallthru
      _
    // Predicated region
    $region34: #{tpu_custom_call.1} parent=1 // pred_check
      _
    $region35: #{tpu_custom_call.1} parent=1 // pred_check_branch
      %497 = sbr.rel (0) target = $region37
    $region36: #{tpu_custom_call.1} parent=1 // pred_region
      %498 = dma.done [#allocation5], 128
    $region37: #{tpu_custom_call.1} parent=1 // pred_fallthru
      _
    %499 = vsyncpa [#allocation4], 1
    %500 = vsyncpa [#allocation7], 1
    %501 = vsyncpa [#allocation5], 1

</llo_original>
